<compile_context>
chip_gen: v6e
topology: v6e:2x2x1
jax: 0.10.0
libtpu: 0.0.40
codegen_flags: <defaults>
</compile_context>

<pallas_src>
import functools

import jax
import jax.numpy as jnp
from jax import lax
from jax.experimental import pallas as pl
from jax.experimental.pallas import tpu as pltpu

TEMPERATURE = 0.07
EPS = 1e-12  # matches torch F.normalize default eps


def _vtc_loss_kernel(inv_temp, txt_ref, vid_ref, out_ref,
                     dot_acc, tss_acc, vss_row_acc):
    k = pl.program_id(0)

    txt = txt_ref[...]                      # native dtype -> MXU operand
    vid = vid_ref[...]
    txt_f = txt.astype(jnp.float32)         # f32 squares for accurate norms
    vid_f = vid.astype(jnp.float32)         # (no-op for f32 inputs)

    # Unnormalized similarity block on the MXU (NT contraction on the hidden
    # axis; Mosaic consumes the transposed operand natively, no vxpose pass).
    prod = lax.dot_general(txt, vid, (((1,), (1,)), ((), ())),
                           preferred_element_type=jnp.float32)            # (bs,bs)

    # Per-row sums of squares:
    #  * txt: lane-reduce straight into the (bs,1) layout the row scale needs.
    #  * vid: ones-row matmul lands the reduction directly in the (1,bs)
    #    lane-major layout the per-column scale needs (rides the MXU, and the
    #    epilogue needs no transpose).
    tss_blk = jnp.sum(txt_f * txt_f, axis=-1, keepdims=True)              # (bs,1)
    vv = vid_f * vid_f
    ones_row = jnp.ones((1, vv.shape[1]), jnp.float32)
    vss_blk = lax.dot_general(ones_row, vv, (((1,), (1,)), ((), ())),
                              preferred_element_type=jnp.float32)          # (1,bs)

    # Init-by-assign on the first block (saves a full bs^2 zeroing store pass).
    @pl.when(k == 0)
    def _assign():
        dot_acc[...] = prod
        tss_acc[...] = tss_blk
        vss_row_acc[...] = vss_blk

    @pl.when(k > 0)
    def _accum():
        dot_acc[...] += prod
        tss_acc[...] += tss_blk
        vss_row_acc[...] += vss_blk

    @pl.when(k == pl.num_programs(0) - 1)
    def _finish():
        # 1/max(||x||, eps) == rsqrt(max(||x||^2, eps^2)): EUP rsqrt + VPU mul.
        inv_tn = lax.rsqrt(jnp.maximum(tss_acc[...], EPS * EPS))          # (bs,1)
        inv_vn = lax.rsqrt(jnp.maximum(vss_row_acc[...], EPS * EPS))      # (1,bs)
        row_scale = inv_tn * inv_temp       # fold 1/T into the O(bs) row scale

        # Overwrite dot_acc in place with the scaled logits (dot_acc is dead
        # after this read) and later with exp(); keeps epilogue peak VMEM to
        # ~one bs^2 buffer plus one temporary.
        dot_acc[...] = dot_acc[...] * row_scale * inv_vn
        lg = dot_acc[...]                                                  # logits

        # Positive pairs = diagonal of the already-scaled logits.
        rows = lax.broadcasted_iota(jnp.int32, lg.shape, 0)
        cols = lax.broadcasted_iota(jnp.int32, lg.shape, 1)
        diag_sum = jnp.sum(jnp.where(rows == cols, lg, 0.0))

        # Constant logsumexp shift: normalized sims are in [-1, 1] so
        # |logits| <= 1/T and exp(logits - 1/T) in [exp(-2/T), 1] — exact LSE,
        # no O(bs^2) max reduce, and exp() starts immediately.
        dot_acc[...] = jnp.exp(lg - inv_temp)
        e = dot_acc[...]
        row_sums = jnp.sum(e, axis=1, keepdims=True)                       # (bs,1)
        col_sums = jnp.sum(e, axis=0, keepdims=True)                       # (1,bs)
        lse_terms = jnp.sum(jnp.log(row_sums)) + jnp.sum(jnp.log(col_sums))

        inv_n = 1.0 / lg.shape[0]
        # (CE_t2v + CE_v2t)/2 = 1/T + (0.5*sum(log-sums) - sum(diag)) / bs
        out_ref[0, 0] = inv_temp + (0.5 * lse_terms - diag_sum) * inv_n


def _vmem_capacity_bytes():
    try:
        return int(pltpu.get_tpu_info().vmem_capacity_bytes)
    except Exception:
        return 128 << 20  # conservative default (v5e/v6e)


def _choose_tk(h, bs, itemsize, vmem_cap):
    """Hidden-dim tile size.

    Full dim when h is not 128-aligned; otherwise the largest multiple-of-128
    divisor of h such that the double-buffered input tiles stay within ~45% of
    physical VMEM (leaves room for the bs^2 accumulator, epilogue temporaries
    and Mosaic scratch) and per-step input bytes stay <= ~16 MB (plenty to
    amortize the ~0.35 us per-grid-step overhead)."""
    if h % 128 != 0:
        return h
    budget = int(vmem_cap * 0.45)
    fixed = 4 * bs * bs + 4 * 8 * bs + (4 << 20)
    avail = max(budget - fixed, 2 * 2 * bs * 128 * itemsize)
    tk_cap = max(128, avail // (2 * 2 * bs * itemsize))
    step_cap = max(128, (16 << 20) // (2 * bs * itemsize))
    tk_cap = min(tk_cap, step_cap, h)
    best = 128
    cand = 128
    while cand <= tk_cap:
        if h % cand == 0:
            best = cand
        cand += 128
    return best


def vtc_loss(src_txt, src_vid, temperature=TEMPERATURE, *, bf16_inputs=False):
    assert src_txt.shape == src_vid.shape, (src_txt.shape, src_vid.shape)
    if bf16_inputs and src_txt.dtype == jnp.float32:
        # Halves HBM traffic and hits the fast bf16 MXU path; ~1e-3-level
        # relative change in the logits (tolerance trade-off), so opt-in only.
        src_txt = src_txt.astype(jnp.bfloat16)
        src_vid = src_vid.astype(jnp.bfloat16)

    bs, h = src_txt.shape
    itemsize = jnp.dtype(src_txt.dtype).itemsize
    vmem_cap = _vmem_capacity_bytes()
    tk = _choose_tk(h, bs, itemsize, vmem_cap)
    nk = h // tk

    # VMEM budget: double-buffered input tiles + persistent scratch
    # + bs^2 epilogue temporaries (iota mask / RHS temps) + Mosaic slack.
    need = (2 * 2 * bs * tk * itemsize       # 2 inputs x 2 pipeline buffers
            + 4 * bs * bs                    # dot_acc
            + 3 * 4 * bs * bs                # epilogue temporaries headroom
            + 4 * 8 * bs                     # small per-row scratch
            + (8 << 20))                     # compiler slack
    vmem_limit = int(min(max(need, 32 << 20), int(vmem_cap * 0.85)))

    kernel = functools.partial(_vtc_loss_kernel, float(1.0 / temperature))

    out = pl.pallas_call(
        kernel,
        out_shape=jax.ShapeDtypeStruct((1, 1), jnp.float32),
        grid=(nk,),
        in_specs=[
            pl.BlockSpec((bs, tk), lambda k: (0, k)),
            pl.BlockSpec((bs, tk), lambda k: (0, k)),
        ],
        out_specs=pl.BlockSpec(memory_space=pltpu.MemorySpace.SMEM),
        scratch_shapes=[
            pltpu.VMEM((bs, bs), jnp.float32),   # dot_acc (logits / exp reuse)
            pltpu.VMEM((bs, 1), jnp.float32),    # txt sum-of-squares
            pltpu.VMEM((1, bs), jnp.float32),    # vid sum-of-squares (lane-major)
        ],
        compiler_params=pltpu.CompilerParams(
            dimension_semantics=("arbitrary",),
            vmem_limit_bytes=vmem_limit,
        ),
    )(src_txt, src_vid)
    return out[0, 0]


def vtc_loss_ref(src_txt, src_vid, temperature=TEMPERATURE):
    """Pure-JAX reference mirroring the PyTorch forward."""
    def normalize(x):
        n = jnp.sqrt(jnp.sum(x * x, axis=1, keepdims=True))
        return x / jnp.maximum(n, EPS)

    t = normalize(src_txt)
    v = normalize(src_vid)
    logits = (t @ v.T) / temperature
    labels = jnp.arange(src_txt.shape[0])

    def ce(lg):
        lse = jax.nn.logsumexp(lg, axis=1)
        return jnp.mean(lse - lg[jnp.arange(lg.shape[0]), labels])

    return (ce(logits) + ce(logits.T)) / 2.0


if __name__ == "__main__":
    key = jax.random.PRNGKey(0)
    k1, k2 = jax.random.split(key)
    bs, h_dim = 8, 32
    src_txt = jax.random.normal(k1, (bs, h_dim), dtype=jnp.float32)
    src_vid = jax.random.normal(k2, (bs, h_dim), dtype=jnp.float32)

    loss = jax.block_until_ready(vtc_loss(src_txt, src_vid))
    ref = jax.block_until_ready(vtc_loss_ref(src_txt, src_vid))

    assert jnp.allclose(loss, ref, rtol=1e-4, atol=1e-4), (loss, ref)
    print("KERNEL_OK")
</pallas_src>

<mosaic_0001>
module attributes {stable_mosaic.version = 11 : i64} {
  func.func @_vtc_loss_kernel(%arg0: i32, %arg1: memref<8x32xf32, #tpu.memory_space<vmem>>, %arg2: memref<8x32xf32, #tpu.memory_space<vmem>>, %arg3: memref<1x1xf32, #tpu.memory_space<smem>>, %arg4: memref<8x8xf32, #tpu.memory_space<vmem>>, %arg5: memref<8x1xf32, #tpu.memory_space<vmem>>, %arg6: memref<1x8xf32, #tpu.memory_space<vmem>>) attributes {dimension_semantics = [#tpu.dimension_semantics<arbitrary>], iteration_bounds = array<i64: 1>, scalar_prefetch = 0 : i64, scratch_operands = 3 : i64, tpu.core_type = #tpu.core_type<tc>, window_params = [{transform_indices = @transform_0, window_bounds = array<i64: 8, 32>}, {transform_indices = @transform_1, window_bounds = array<i64: 8, 32>}, {transform_indices = @transform_2, window_bounds = array<i64: 1, 1>}]} {
    %c0 = arith.constant 0 : index
    %c0_0 = arith.constant 0 : index
    %0 = vector.load %arg1[%c0, %c0_0] : memref<8x32xf32, #tpu.memory_space<vmem>>, vector<8x32xf32>
    %c0_1 = arith.constant 0 : index
    %c0_2 = arith.constant 0 : index
    %1 = vector.load %arg2[%c0_1, %c0_2] : memref<8x32xf32, #tpu.memory_space<vmem>>, vector<8x32xf32>
    %cst = arith.constant dense<0.000000e+00> : vector<8x8xf32>
    %2 = tpu.matmul %0, %1, %cst {dimension_numbers = #tpu.dot_dimension_numbers<[1], [1], [0], [0], [0, 0, 1, 0], [], []>} : vector<8x32xf32>, vector<8x32xf32>, vector<8x8xf32> -> vector<8x8xf32>
    %3 = arith.mulf %0, %0 : vector<8x32xf32>
    %cst_3 = arith.constant dense<0.000000e+00> : vector<8xf32>
    %4 = vector.multi_reduction <add>, %3, %cst_3 [1] : vector<8x32xf32> to vector<8xf32>
    %5 = vector.shape_cast %4 : vector<8xf32> to vector<8x1xf32>
    %6 = arith.mulf %1, %1 : vector<8x32xf32>
    %cst_4 = arith.constant 1.000000e+00 : f32
    %7 = vector.broadcast %cst_4 : f32 to vector<1x32xf32>
    %cst_5 = arith.constant dense<0.000000e+00> : vector<1x8xf32>
    %8 = tpu.matmul %7, %6, %cst_5 {dimension_numbers = #tpu.dot_dimension_numbers<[1], [1], [0], [0], [0, 0, 1, 0], [], []>} : vector<1x32xf32>, vector<8x32xf32>, vector<1x8xf32> -> vector<1x8xf32>
    %c0_i32 = arith.constant 0 : i32
    %9 = arith.cmpi eq, %arg0, %c0_i32 : i32
    %10 = arith.extui %9 : i1 to i32
    %c0_i32_6 = arith.constant 0 : i32
    %11 = arith.cmpi ne, %10, %c0_i32_6 : i32
    scf.if %11 {
      %c0_11 = arith.constant 0 : index
      %c0_12 = arith.constant 0 : index
      %18 = vector.load %arg4[%c0_11, %c0_12] : memref<8x8xf32, #tpu.memory_space<vmem>>, vector<8x8xf32>
      tpu.vector_store %arg4[%c0_11, %c0_12], %2 {strides = array<i32>} : memref<8x8xf32, #tpu.memory_space<vmem>>, vector<8x8xf32>,
      %c0_13 = arith.constant 0 : index
      %c0_14 = arith.constant 0 : index
      %19 = vector.load %arg5[%c0_13, %c0_14] : memref<8x1xf32, #tpu.memory_space<vmem>>, vector<8x1xf32>
      tpu.vector_store %arg5[%c0_13, %c0_14], %5 {strides = array<i32>} : memref<8x1xf32, #tpu.memory_space<vmem>>, vector<8x1xf32>,
      %c0_15 = arith.constant 0 : index
      %c0_16 = arith.constant 0 : index
      %20 = vector.load %arg6[%c0_15, %c0_16] : memref<1x8xf32, #tpu.memory_space<vmem>>, vector<1x8xf32>
      tpu.vector_store %arg6[%c0_15, %c0_16], %8 {strides = array<i32>} : memref<1x8xf32, #tpu.memory_space<vmem>>, vector<1x8xf32>,
    } else {
    }
    %c0_i32_7 = arith.constant 0 : i32
    %12 = arith.cmpi sgt, %arg0, %c0_i32_7 : i32
    %13 = arith.extui %12 : i1 to i32
    %c0_i32_8 = arith.constant 0 : i32
    %14 = arith.cmpi ne, %13, %c0_i32_8 : i32
    scf.if %14 {
      %c0_11 = arith.constant 0 : index
      %c0_12 = arith.constant 0 : index
      %18 = vector.load %arg4[%c0_11, %c0_12] : memref<8x8xf32, #tpu.memory_space<vmem>>, vector<8x8xf32>
      %19 = arith.addf %18, %2 : vector<8x8xf32>
      %c0_13 = arith.constant 0 : index
      %c0_14 = arith.constant 0 : index
      %20 = vector.load %arg4[%c0_13, %c0_14] : memref<8x8xf32, #tpu.memory_space<vmem>>, vector<8x8xf32>
      tpu.vector_store %arg4[%c0_13, %c0_14], %19 {strides = array<i32>} : memref<8x8xf32, #tpu.memory_space<vmem>>, vector<8x8xf32>,
      %c0_15 = arith.constant 0 : index
      %c0_16 = arith.constant 0 : index
      %21 = vector.load %arg5[%c0_15, %c0_16] : memref<8x1xf32, #tpu.memory_space<vmem>>, vector<8x1xf32>
      %22 = arith.addf %21, %5 : vector<8x1xf32>
      %c0_17 = arith.constant 0 : index
      %c0_18 = arith.constant 0 : index
      %23 = vector.load %arg5[%c0_17, %c0_18] : memref<8x1xf32, #tpu.memory_space<vmem>>, vector<8x1xf32>
      tpu.vector_store %arg5[%c0_17, %c0_18], %22 {strides = array<i32>} : memref<8x1xf32, #tpu.memory_space<vmem>>, vector<8x1xf32>,
      %c0_19 = arith.constant 0 : index
      %c0_20 = arith.constant 0 : index
      %24 = vector.load %arg6[%c0_19, %c0_20] : memref<1x8xf32, #tpu.memory_space<vmem>>, vector<1x8xf32>
      %25 = arith.addf %24, %8 : vector<1x8xf32>
      %c0_21 = arith.constant 0 : index
      %c0_22 = arith.constant 0 : index
      %26 = vector.load %arg6[%c0_21, %c0_22] : memref<1x8xf32, #tpu.memory_space<vmem>>, vector<1x8xf32>
      tpu.vector_store %arg6[%c0_21, %c0_22], %25 {strides = array<i32>} : memref<1x8xf32, #tpu.memory_space<vmem>>, vector<1x8xf32>,
    } else {
    }
    %c0_i32_9 = arith.constant 0 : i32
    %15 = arith.cmpi eq, %arg0, %c0_i32_9 : i32
    %16 = arith.extui %15 : i1 to i32
    %c0_i32_10 = arith.constant 0 : i32
    %17 = arith.cmpi ne, %16, %c0_i32_10 : i32
    scf.if %17 {
      %c0_11 = arith.constant 0 : index
      %c0_12 = arith.constant 0 : index
      %18 = vector.load %arg5[%c0_11, %c0_12] : memref<8x1xf32, #tpu.memory_space<vmem>>, vector<8x1xf32>
      %cst_13 = arith.constant 1.000000e-24 : f32
      %19 = vector.broadcast %cst_13 : f32 to vector<8x1xf32>
      %20 = arith.maximumf %18, %19 : vector<8x1xf32>
      %21 = math.rsqrt %20 : vector<8x1xf32>
      %c0_14 = arith.constant 0 : index
      %c0_15 = arith.constant 0 : index
      %22 = vector.load %arg6[%c0_14, %c0_15] : memref<1x8xf32, #tpu.memory_space<vmem>>, vector<1x8xf32>
      %cst_16 = arith.constant 1.000000e-24 : f32
      %23 = vector.broadcast %cst_16 : f32 to vector<1x8xf32>
      %24 = arith.maximumf %22, %23 : vector<1x8xf32>
      %25 = math.rsqrt %24 : vector<1x8xf32>
      %cst_17 = arith.constant 14.2857141 : f32
      %26 = vector.broadcast %cst_17 : f32 to vector<8x1xf32>
      %27 = arith.mulf %21, %26 : vector<8x1xf32>
      %c0_18 = arith.constant 0 : index
      %c0_19 = arith.constant 0 : index
      %28 = vector.load %arg4[%c0_18, %c0_19] : memref<8x8xf32, #tpu.memory_space<vmem>>, vector<8x8xf32>
      %29 = vector.broadcast %27 : vector<8x1xf32> to vector<8x8xf32>
      %30 = arith.mulf %28, %29 : vector<8x8xf32>
      %31 = vector.broadcast %25 : vector<1x8xf32> to vector<8x8xf32>
      %32 = arith.mulf %30, %31 : vector<8x8xf32>
      %c0_20 = arith.constant 0 : index
      %c0_21 = arith.constant 0 : index
      %33 = vector.load %arg4[%c0_20, %c0_21] : memref<8x8xf32, #tpu.memory_space<vmem>>, vector<8x8xf32>
      tpu.vector_store %arg4[%c0_20, %c0_21], %32 {strides = array<i32>} : memref<8x8xf32, #tpu.memory_space<vmem>>, vector<8x8xf32>,
      %c0_22 = arith.constant 0 : index
      %c0_23 = arith.constant 0 : index
      %34 = vector.load %arg4[%c0_22, %c0_23] : memref<8x8xf32, #tpu.memory_space<vmem>>, vector<8x8xf32>
      %35 = tpu.iota {dimensions = array<i32: 0>} : vector<8x8xi32>
      %36 = tpu.iota {dimensions = array<i32: 1>} : vector<8x8xi32>
      %37 = arith.cmpi eq, %35, %36 : vector<8x8xi32>
      %cst_24 = arith.constant 0.000000e+00 : f32
      %38 = vector.broadcast %cst_24 : f32 to vector<8x8xf32>
      %39 = arith.select %37, %34, %38 : vector<8x8xi1>, vector<8x8xf32>
      %40 = vector.shape_cast %39 : vector<8x8xf32> to vector<1x8x8xf32>
      %cst_25 = arith.constant dense<0.000000e+00> : vector<1xf32>
      %41 = vector.multi_reduction <add>, %40, %cst_25 [1, 2] : vector<1x8x8xf32> to vector<1xf32>
      %42 = vector.shape_cast %41 : vector<1xf32> to vector<1x1x1xf32>
      %43 = vector.extract %42[0, 0, 0] : f32 from vector<1x1x1xf32>
      %cst_26 = arith.constant 14.2857141 : f32
      %44 = vector.broadcast %cst_26 : f32 to vector<8x8xf32>
      %45 = arith.subf %34, %44 : vector<8x8xf32>
      %46 = math.exp %45 : vector<8x8xf32>
      %c0_27 = arith.constant 0 : index
      %c0_28 = arith.constant 0 : index
      %47 = vector.load %arg4[%c0_27, %c0_28] : memref<8x8xf32, #tpu.memory_space<vmem>>, vector<8x8xf32>
      tpu.vector_store %arg4[%c0_27, %c0_28], %46 {strides = array<i32>} : memref<8x8xf32, #tpu.memory_space<vmem>>, vector<8x8xf32>,
      %c0_29 = arith.constant 0 : index
      %c0_30 = arith.constant 0 : index
      %48 = vector.load %arg4[%c0_29, %c0_30] : memref<8x8xf32, #tpu.memory_space<vmem>>, vector<8x8xf32>
      %cst_31 = arith.constant dense<0.000000e+00> : vector<8xf32>
      %49 = vector.multi_reduction <add>, %48, %cst_31 [1] : vector<8x8xf32> to vector<8xf32>
      %50 = vector.shape_cast %49 : vector<8xf32> to vector<8x1xf32>
      %cst_32 = arith.constant dense<0.000000e+00> : vector<8xf32>
      %51 = vector.multi_reduction <add>, %48, %cst_32 [0] : vector<8x8xf32> to vector<8xf32>
      %52 = vector.shape_cast %51 : vector<8xf32> to vector<1x8xf32>
      %53 = math.log %50 : vector<8x1xf32>
      %54 = vector.shape_cast %53 : vector<8x1xf32> to vector<1x8x1xf32>
      %cst_33 = arith.constant dense<0.000000e+00> : vector<1xf32>
      %55 = vector.multi_reduction <add>, %54, %cst_33 [1, 2] : vector<1x8x1xf32> to vector<1xf32>
      %56 = vector.shape_cast %55 : vector<1xf32> to vector<1x1x1xf32>
      %57 = vector.extract %56[0, 0, 0] : f32 from vector<1x1x1xf32>
      %58 = math.log %52 : vector<1x8xf32>
      %59 = vector.shape_cast %58 : vector<1x8xf32> to vector<1x1x8xf32>
      %cst_34 = arith.constant dense<0.000000e+00> : vector<1xf32>
      %60 = vector.multi_reduction <add>, %59, %cst_34 [1, 2] : vector<1x1x8xf32> to vector<1xf32>
      %61 = vector.shape_cast %60 : vector<1xf32> to vector<1x1x1xf32>
      %62 = vector.extract %61[0, 0, 0] : f32 from vector<1x1x1xf32>
      %63 = arith.addf %57, %62 : f32
      %cst_35 = arith.constant 5.000000e-01 : f32
      %64 = arith.mulf %cst_35, %63 : f32
      %65 = arith.subf %64, %43 : f32
      %cst_36 = arith.constant 1.250000e-01 : f32
      %66 = arith.mulf %65, %cst_36 : f32
      %cst_37 = arith.constant 14.2857141 : f32
      %67 = arith.addf %cst_37, %66 : f32
      %c0_38 = arith.constant 0 : index
      %c0_39 = arith.constant 0 : index
      %68 = memref.load %arg3[%c0_38, %c0_39] : memref<1x1xf32, #tpu.memory_space<smem>>
      memref.store %67, %arg3[%c0_38, %c0_39] : memref<1x1xf32, #tpu.memory_space<smem>>
    } else {
    }
    return
  }
  func.func @transform_0(%arg0: i32) -> (i32, i32) {
    %c0_i32 = arith.constant 0 : i32
    %c0_i32_0 = arith.constant 0 : i32
    return %c0_i32, %arg0 : i32, i32
  }
  func.func @transform_1(%arg0: i32) -> (i32, i32) {
    %c0_i32 = arith.constant 0 : i32
    %c0_i32_0 = arith.constant 0 : i32
    return %c0_i32, %arg0 : i32, i32
  }
  func.func @transform_2(%arg0: i32) -> (i32, i32) {
    %c0_i32 = arith.constant 0 : i32
    %c0_i32_0 = arith.constant 0 : i32
    %c0_i32_1 = arith.constant 0 : i32
    return %c0_i32, %c0_i32_0 : i32, i32
  }
}

</mosaic_0001>

<llo_original>
// kernel: tpu_custom_call.1
$region0: #{tpu_custom_call.1}
  #allocation0 [shape = 'u32[]', space=smem, size = 0x4, offset = 0x4, fixed_abs, tag = 'smem constant byte address 0x4 - core index']
  #allocation1 [shape = 'u32[144,128]{1,0:T(1,128)}', space=vmem, size = 0x12000, scoped, tag = 'internal scratch']
  #allocation2 [shape = 'f32[8,8]{1,0:T(8,128)}', space=vmem, size = 0x1000, scoped, tag = 'scratch operand']
  #allocation3 [shape = 'f32[8,1]{1,0:T(8,128)}', space=vmem, size = 0x1000, scoped, tag = 'scratch operand']
  #allocation4 [shape = 'f32[1,8]{1,0:T(1,128)}', space=vmem, size = 0x200, scoped, tag = 'scratch operand']
  %s0 = inlined_call_operand.hbm [shape: f32[8,32], index: 0, kind: input, shape index: {}]
  %s1 = inlined_call_operand.hbm [shape: f32[8,32], index: 1, kind: input, shape index: {}]
  %s2 = inlined_call_operand.hbm [shape: f32[1,1], index: 2, kind: output, shape index: {}]
  %s3 = sld [smem:[#allocation0]]
  $region38: #{tpu_custom_call.1} parent=0
    _
  %s5 = ssub.s32 1, %s3
  %s6 = scalar_select 0, %s5, %s3
  $region1: #{tpu_custom_call.1} parent=0
    #allocation5 [shape = 'u8[4096]{0}', space=vmem, size = 0x1000, scoped, tag = 'input window, operand 0, single buffered']
    #allocation6 [shape = 's32[1]{0}', space=sflag, size = 0x4, scoped, tag = 'scoped memory for tpu_custom_call.1']
    #allocation7 [shape = 's32[1]{0}', space=sflag, size = 0x4, scoped, tag = 'scoped memory for tpu_custom_call.1']
    #allocation8 [shape = 'u8[4096]{0}', space=vmem, size = 0x1000, scoped, tag = 'input window, operand 1, single buffered']
    #allocation9 [shape = 's32[1]{0}', space=sflag, size = 0x4, scoped, tag = 'scoped memory for tpu_custom_call.1']
    #allocation10 [shape = 'u8[512]{0}', space=smem, size = 0x200, scoped, tag = 'output window, operand 0, single buffered']
    %7 = vsyncpa [#allocation6], 0
    %8 = vsyncpa [#allocation9], 0
    %9 = vsyncpa [#allocation7], 0
    // Predicated region
    $region2: #{tpu_custom_call.1} parent=1 // pred_check
      _
    $region3: #{tpu_custom_call.1} parent=1 // pred_check_branch
      %11 = sbr.rel (0) target = $region5
    $region4: #{tpu_custom_call.1} parent=1 // pred_region
      %s13 = ssub.s32 128, 128
      %14 = vsyncadd [#allocation6], %s13
      %s16 = sshll.u32 [#allocation5], 4
      %s17 = int_to_ptr.vmem [resolvable:$true] %s16
      %19 = dma.hbm_to_vmem [thread:$0]  %s0, 128, %s17, [#allocation6]
    $region5: #{tpu_custom_call.1} parent=1 // pred_fallthru
      _
    // Predicated region
    $region6: #{tpu_custom_call.1} parent=1 // pred_check
      _
    $region7: #{tpu_custom_call.1} parent=1 // pred_check_branch
      %21 = sbr.rel (0) target = $region9
    $region8: #{tpu_custom_call.1} parent=1 // pred_region
      %s23 = ssub.s32 128, 128
      %24 = vsyncadd [#allocation9], %s23
      %s26 = sshll.u32 [#allocation8], 4
      %s27 = int_to_ptr.vmem [resolvable:$true] %s26
      %29 = dma.hbm_to_vmem [thread:$0]  %s1, 128, %s27, [#allocation9]
    $region9: #{tpu_custom_call.1} parent=1 // pred_fallthru
      _
    // Predicated region
    $region10: #{tpu_custom_call.1} parent=1 // pred_check
      _
    $region11: #{tpu_custom_call.1} parent=1 // pred_check_branch
      %31 = sbr.rel (0) target = $region13
    $region12: #{tpu_custom_call.1} parent=1 // pred_region
      %32 = dma.done [#allocation6], 128
    $region13: #{tpu_custom_call.1} parent=1 // pred_fallthru
      _
    // Predicated region
    $region14: #{tpu_custom_call.1} parent=1 // pred_check
      _
    $region15: #{tpu_custom_call.1} parent=1 // pred_check_branch
      %34 = sbr.rel (0) target = $region17
    $region16: #{tpu_custom_call.1} parent=1 // pred_region
      %35 = dma.done [#allocation9], 128
    $region17: #{tpu_custom_call.1} parent=1 // pred_fallthru
      _
    %v36 = vld [vmem:[#allocation5] sm:$0xff]
    %v37 = vld [vmem:[#allocation8] sm:$0xff]
    %vm38 = vcmask 261120
    %v40 = vsel %vm38, %v36, 0
    %v43 = vsel %vm38, %v37, 0
    %45 = vmatprep.subr.mxu0 0.0
    %46 = vmatpush1.xpose.msra.mxu0 0.0
    %47 = vmatprep.subr.mxu0 0.0
    %48 = vmatpush1.xpose.msra.mxu0 0.0
    %49 = vmatprep.subr.mxu0 0.0
    %50 = vmatpush1.xpose.msra.mxu0 0.0
    %51 = vmatprep.subr.mxu0 0.0
    %52 = vmatpush1.xpose.msra.mxu0 0.0
    %53 = vmatprep.subr.mxu0 0.0
    %54 = vmatpush1.xpose.msra.mxu0 0.0
    %55 = vmatprep.subr.mxu0 0.0
    %56 = vmatpush1.xpose.msra.mxu0 0.0
    %57 = vmatprep.subr.mxu0 0.0
    %58 = vmatpush1.xpose.msra.mxu0 0.0
    %59 = vmatprep.subr.mxu0 0.0
    %60 = vmatpush1.xpose.msra.mxu0 0.0
    %61 = vmatprep.subr.mxu0 0.0
    %62 = vmatpush1.xpose.msra.mxu0 0.0
    %63 = vmatprep.subr.mxu0 0.0
    %64 = vmatpush1.xpose.msra.mxu0 0.0
    %65 = vmatprep.subr.mxu0 0.0
    %66 = vmatpush1.xpose.msra.mxu0 0.0
    %67 = vmatprep.subr.mxu0 0.0
    %68 = vmatpush1.xpose.msra.mxu0 0.0
    %69 = vmatprep.subr.mxu0 0.0
    %70 = vmatpush1.xpose.msra.mxu0 0.0
    %71 = vmatprep.subr.mxu0 0.0
    %72 = vmatpush1.xpose.msra.mxu0 0.0
    %73 = vmatprep.subr.mxu0 0.0
    %74 = vmatpush1.xpose.msra.mxu0 0.0
    %75 = vmatprep.subr.mxu0 0.0
    %76 = vmatpush1.xpose.msra.mxu0 %v43
    %77 = vmatprep.subr.mxu0 0.0
    %78 = vmatpush2.xpose.msra.mxu0 0.0
    %79 = vmatprep.subr.mxu0 0.0
    %80 = vmatpush2.xpose.msra.mxu0 0.0
    %81 = vmatprep.subr.mxu0 0.0
    %82 = vmatpush2.xpose.msra.mxu0 0.0
    %83 = vmatprep.subr.mxu0 0.0
    %84 = vmatpush2.xpose.msra.mxu0 0.0
    %85 = vmatprep.subr.mxu0 0.0
    %86 = vmatpush2.xpose.msra.mxu0 0.0
    %87 = vmatprep.subr.mxu0 0.0
    %88 = vmatpush2.xpose.msra.mxu0 0.0
    %89 = vmatprep.subr.mxu0 0.0
    %90 = vmatpush2.xpose.msra.mxu0 0.0
    %91 = vmatprep.subr.mxu0 0.0
    %92 = vmatpush2.xpose.msra.mxu0 0.0
    %93 = vmatprep.subr.mxu0 0.0
    %94 = vmatpush2.xpose.msra.mxu0 0.0
    %95 = vmatprep.subr.mxu0 0.0
    %96 = vmatpush2.xpose.msra.mxu0 0.0
    %97 = vmatprep.subr.mxu0 0.0
    %98 = vmatpush2.xpose.msra.mxu0 0.0
    %99 = vmatprep.subr.mxu0 0.0
    %100 = vmatpush2.xpose.msra.mxu0 0.0
    %101 = vmatprep.subr.mxu0 0.0
    %102 = vmatpush2.xpose.msra.mxu0 0.0
    %103 = vmatprep.subr.mxu0 0.0
    %104 = vmatpush2.xpose.msra.mxu0 0.0
    %105 = vmatprep.subr.mxu0 0.0
    %106 = vmatpush2.xpose.msra.mxu0 0.0
    %107 = vmatprep.subr.mxu0 0.0
    %108 = vmatpush2.xpose.msra.mxu0 0.0
    %109 = vmatprep.mubr.f32.mxu0 0.0
    %110 = vmatmul.mubr.f32.gmra.mxu0 %v40
    %v111 = vpop.f32.mrf.mxu0
    %v112 = vadd.f32 0.0, %v111
    %v113 = vpop.f32.mrf.mxu0
    %114 = vdwg.mxu0
    %v115 = vmul.f32 %v36, %v36
    %v116 = vsel %vm38, %v115, 0.0
    %117 = vadd.xlane.f32.xlu0 %v116
    %v118 = vpop.xlane.xlu0 %117
    %v119 = vmul.f32 %v37, %v37
    %v121 = vsel %vm38, 1.0, 0
    %v124 = vsel %vm38, %v119, 0
    %126 = vmatprep.subr.mxu0 0.0
    %127 = vmatpush1.xpose.msra.mxu0 0.0
    %128 = vmatprep.subr.mxu0 0.0
    %129 = vmatpush1.xpose.msra.mxu0 0.0
    %130 = vmatprep.subr.mxu0 0.0
    %131 = vmatpush1.xpose.msra.mxu0 0.0
    %132 = vmatprep.subr.mxu0 0.0
    %133 = vmatpush1.xpose.msra.mxu0 0.0
    %134 = vmatprep.subr.mxu0 0.0
    %135 = vmatpush1.xpose.msra.mxu0 0.0
    %136 = vmatprep.subr.mxu0 0.0
    %137 = vmatpush1.xpose.msra.mxu0 0.0
    %138 = vmatprep.subr.mxu0 0.0
    %139 = vmatpush1.xpose.msra.mxu0 0.0
    %140 = vmatprep.subr.mxu0 0.0
    %141 = vmatpush1.xpose.msra.mxu0 0.0
    %142 = vmatprep.subr.mxu0 0.0
    %143 = vmatpush1.xpose.msra.mxu0 0.0
    %144 = vmatprep.subr.mxu0 0.0
    %145 = vmatpush1.xpose.msra.mxu0 0.0
    %146 = vmatprep.subr.mxu0 0.0
    %147 = vmatpush1.xpose.msra.mxu0 0.0
    %148 = vmatprep.subr.mxu0 0.0
    %149 = vmatpush1.xpose.msra.mxu0 0.0
    %150 = vmatprep.subr.mxu0 0.0
    %151 = vmatpush1.xpose.msra.mxu0 0.0
    %152 = vmatprep.subr.mxu0 0.0
    %153 = vmatpush1.xpose.msra.mxu0 0.0
    %154 = vmatprep.subr.mxu0 0.0
    %155 = vmatpush1.xpose.msra.mxu0 0.0
    %156 = vmatprep.subr.mxu0 0.0
    %157 = vmatpush1.xpose.msra.mxu0 %v124
    %158 = vmatprep.subr.mxu0 0.0
    %159 = vmatpush2.xpose.msra.mxu0 0.0
    %160 = vmatprep.subr.mxu0 0.0
    %161 = vmatpush2.xpose.msra.mxu0 0.0
    %162 = vmatprep.subr.mxu0 0.0
    %163 = vmatpush2.xpose.msra.mxu0 0.0
    %164 = vmatprep.subr.mxu0 0.0
    %165 = vmatpush2.xpose.msra.mxu0 0.0
    %166 = vmatprep.subr.mxu0 0.0
    %167 = vmatpush2.xpose.msra.mxu0 0.0
    %168 = vmatprep.subr.mxu0 0.0
    %169 = vmatpush2.xpose.msra.mxu0 0.0
    %170 = vmatprep.subr.mxu0 0.0
    %171 = vmatpush2.xpose.msra.mxu0 0.0
    %172 = vmatprep.subr.mxu0 0.0
    %173 = vmatpush2.xpose.msra.mxu0 0.0
    %174 = vmatprep.subr.mxu0 0.0
    %175 = vmatpush2.xpose.msra.mxu0 0.0
    %176 = vmatprep.subr.mxu0 0.0
    %177 = vmatpush2.xpose.msra.mxu0 0.0
    %178 = vmatprep.subr.mxu0 0.0
    %179 = vmatpush2.xpose.msra.mxu0 0.0
    %180 = vmatprep.subr.mxu0 0.0
    %181 = vmatpush2.xpose.msra.mxu0 0.0
    %182 = vmatprep.subr.mxu0 0.0
    %183 = vmatpush2.xpose.msra.mxu0 0.0
    %184 = vmatprep.subr.mxu0 0.0
    %185 = vmatpush2.xpose.msra.mxu0 0.0
    %186 = vmatprep.subr.mxu0 0.0
    %187 = vmatpush2.xpose.msra.mxu0 0.0
    %188 = vmatprep.subr.mxu0 0.0
    %189 = vmatpush2.xpose.msra.mxu0 0.0
    %190 = vmatprep.mubr.f32.mxu0 0.0
    %191 = vmatmul.mubr.f32.gmra.mxu0 %v121
    %v192 = vpop.f32.mrf.mxu0
    %v193 = vadd.f32 0.0, %v192
    %v194 = vpop.f32.mrf.mxu0
    %195 = vdwg.mxu0
    %p196 = scmp.eq.s32.totalorder 0, 0
    // Predicated region
    $region18: #{tpu_custom_call.1} parent=1 // pred_check
      %p197 = pneg %p196
    $region19: #{tpu_custom_call.1} parent=1 // pred_check_branch
      %199 = sbr.rel (%p197) target = $region21
    $region20: #{tpu_custom_call.1} parent=1 // pred_region
      %vm200 = vcmask 64512
      %201 = vst.msk [vmem:[#allocation2] sm:$0xff] %vm200, %v112
      %vm202 = vcmask 7168
      %203 = vst.msk [vmem:[#allocation3] sm:$0xff] %vm202, %v118
      %vm204 = vcmask 57344
      %205 = vst.msk [vmem:[#allocation4] sm:$0x1] %vm204, %v193
    $region21: #{tpu_custom_call.1} parent=1 // pred_fallthru
      _
    %p206 = scmp.gt.s32.totalorder 0, 0
    // Predicated region
    $region22: #{tpu_custom_call.1} parent=1 // pred_check
      %p207 = pneg %p206
    $region23: #{tpu_custom_call.1} parent=1 // pred_check_branch
      %209 = sbr.rel (%p207) target = $region25
    $region24: #{tpu_custom_call.1} parent=1 // pred_region
      %v210 = vld [vmem:[#allocation2] sm:$0xff]
      %v211 = vadd.f32 %v210, %v112
      %vm212 = vcmask 64512
      %213 = vst.msk [vmem:[#allocation2] sm:$0xff] %vm212, %v211
      %v214 = vld [vmem:[#allocation3] sm:$0xff]
      %v215 = vadd.f32 %v214, %v118
      %vm216 = vcmask 7168
      %217 = vst.msk [vmem:[#allocation3] sm:$0xff] %vm216, %v215
      %v218 = vld [vmem:[#allocation4] sm:$0x1]
      %v219 = vadd.f32 %v218, %v193
      %vm220 = vcmask 57344
      %221 = vst.msk [vmem:[#allocation4] sm:$0x1] %vm220, %v219
    $region25: #{tpu_custom_call.1} parent=1 // pred_fallthru
      _
    // Predicated region
    $region26: #{tpu_custom_call.1} parent=1 // pred_check
      %p222 = pneg %p196
    $region27: #{tpu_custom_call.1} parent=1 // pred_check_branch
      %224 = sbr.rel (%p222) target = $region29
    $region28: #{tpu_custom_call.1} parent=1 // pred_region
      %v225 = vld [vmem:[#allocation3] sm:$0xff]
      %v226 = vmax.f32 %v225, 1e-24
      %v227 = vrsqrt.pop %v226
      %v228 = vld [vmem:[#allocation4] sm:$0x1]
      %v229 = vmax.f32 %v228, 1e-24
      %v230 = vrsqrt.pop %v229
      %v231 = vmul.f32 %v227, 14.285714
      %v232 = vld [vmem:[#allocation2] sm:$0xff]
      %234 = vset.pattern.permute.xlu0 0
      %235 = vperm.xlu0 %234, %v231
      %v236 = vpop.permute.xlu0 %235
      %v238 = vmul.f32 %v232, %v236
      %v240 = vlaneseq
      %v241 = vshrl.u32 %v240, 7
      %v242 = vsub.s32 0, %v241
      %v243 = vrot.slane %v230, %v242
      %v245 = vmul.f32 %v238, %v243
      %vm246 = vcmask 64512
      %247 = vst.msk [vmem:[#allocation2] sm:$0xff] %vm246, %v245
      %v248 = vld [vmem:[#allocation2] sm:$0xff]
      %v249 = vlaneseq
      %v250 = vshrl.u32 %v249, 7
      %v251 = vlaneseq
      %v252 = vand.u32 %v251, 127
      %vm253 = vcmp.eq.s32.totalorder %v250, %v252
      %v254 = vsel %vm253, %v248, 0.0
      %v255 = vsel %vm246, %v254, 0.0
      %256 = vadd.xlane.f32.xlu0 %v255
      %v257 = vpop.xlane.xlu0 %256
      %v258 = vrot.slane %v257, 4
      %v259 = vadd.f32 %v257, %v258
      %v260 = vrot.slane %v259, 2
      %v261 = vadd.f32 %v259, %v260
      %v262 = vrot.slane %v261, 1
      %v263 = vadd.f32 %v261, %v262
      %s264 = vtos %v263
      %v265 = vsub.f32 %v248, 14.285714
      %v266 = vmul.f32 %v265, 1.442695
      %v267 = vpow.pop %v266
      %268 = vst.msk [vmem:[#allocation2] sm:$0xff] %vm246, %v267
      %v269 = vld [vmem:[#allocation2] sm:$0xff]
      %v270 = vsel %vm246, %v269, 0.0
      %271 = vadd.xlane.f32.xlu0 %v270
      %v272 = vpop.xlane.xlu0 %271
      %v273 = vrot.slane %v270, 4
      %v274 = vadd.f32 %v270, %v273
      %v275 = vrot.slane %v274, 2
      %v276 = vadd.f32 %v274, %v275
      %v277 = vrot.slane %v276, 1
      %v278 = vadd.f32 %v276, %v277
      %v279 = vlog2.pop %v272
      %v280 = vmul.f32 %v279, 0.6931472
      %vm281 = vcmask 7168
      %v282 = vsel %vm281, %v280, 0.0
      %283 = vadd.xlane.f32.xlu0 %v282
      %v284 = vpop.xlane.xlu0 %283
      %v285 = vrot.slane %v284, 4
      %v286 = vadd.f32 %v284, %v285
      %v287 = vrot.slane %v286, 2
      %v288 = vadd.f32 %v286, %v287
      %v289 = vrot.slane %v288, 1
      %v290 = vadd.f32 %v288, %v289
      %s291 = vtos %v290
      %v292 = vlog2.pop %v278
      %v293 = vmul.f32 %v292, 0.6931472
      %vm294 = vcmask 57344
      %v295 = vsel %vm294, %v293, 0.0
      %296 = vadd.xlane.f32.xlu0 %v295
      %v297 = vpop.xlane.xlu0 %296
      %v298 = vrot.slane %v297, 4
      %v299 = vadd.f32 %v297, %v298
      %v300 = vrot.slane %v299, 2
      %v301 = vadd.f32 %v299, %v300
      %v302 = vrot.slane %v301, 1
      %v303 = vadd.f32 %v301, %v302
      %s304 = vtos %v303
      %s305 = sadd.f32 %s291, %s304
      %s306 = smul.f32 %s305, 0.5
      %s307 = ssub.f32 %s306, %s264
      %s308 = smul.f32 %s307, 0.125
      %s309 = sadd.f32 %s308, 14.285714
      %s310 = scalar_lea.smem [#allocation10], 0
      %311 = sst [smem:[%s310]] %s309
    $region29: #{tpu_custom_call.1} parent=1 // pred_fallthru
      _
    // Predicated region
    $region30: #{tpu_custom_call.1} parent=1 // pred_check
      _
    $region31: #{tpu_custom_call.1} parent=1 // pred_check_branch
      %313 = sbr.rel (0) target = $region33
    $region32: #{tpu_custom_call.1} parent=1 // pred_region
      %s315 = ssub.s32 16, 16
      %316 = vsyncadd [#allocation7], %s315
      %319 = dma.smem_to_hbm [#allocation10], 16, %s2, [#allocation7]
    $region33: #{tpu_custom_call.1} parent=1 // pred_fallthru
      _
    // Predicated region
    $region34: #{tpu_custom_call.1} parent=1 // pred_check
      _
    $region35: #{tpu_custom_call.1} parent=1 // pred_check_branch
      %321 = sbr.rel (0) target = $region37
    $region36: #{tpu_custom_call.1} parent=1 // pred_region
      %322 = dma.done [#allocation7], 16
    $region37: #{tpu_custom_call.1} parent=1 // pred_fallthru
      _
    %323 = sfence
    %324 = vsyncpa [#allocation6], 1
    %325 = vsyncpa [#allocation9], 1
    %326 = vsyncpa [#allocation7], 1

</llo_original>
